<compile_context>
chip_gen: v6e
topology: v6e:2x2x1
jax: 0.10.0
libtpu: 0.0.40
codegen_flags: <defaults>
</compile_context>

<pallas_src>
import jax
import jax.numpy as jnp
from jax.experimental import pallas as pl
from jax.experimental.pallas import tpu as pltpu

# Small logical shapes consistent with the module's forward.
B, S, H, VOCAB = 2, 8, 32, 64
# Lane/sublane-dense padded shapes used by the kernel (padding is zeros, applied once).
B_PAD = 8         # batch padded to one full f32 sublane tile
H_PAD = 128       # hidden dim padded to one full vreg lane width
OUT_PAD = 128     # reward head output padded to a lane-dense slab (lane 0 is real)


def reward_cls_kernel(ids_ref, mask_ref, emb_ref, w_enc_ref, b_enc_ref,
                      w_head_ref, b_head_ref, out_ref, x_buf):
    """Fused CLS-only forward:

       emb_cls = embedding[input_ids[:, 0]]            # in-kernel VMEM row gather
       x       = emb_cls * attention_mask[:, 0]        # scalar mask per row (SMEM)
       hidden  = tanh(x @ W_enc + b_enc)               # synthetic base encoder (CLS rows only)
       reward  = sum(hidden * w_head_row, -1) + b_head # nn.Linear(H, 1) as VPU mul + lane reduce
       (nn.Dropout(0.3) is identity at inference -> no-op here)
    """
    # --- Gather the B CLS embedding rows from the VMEM-resident table. ---
    x_buf[...] = jnp.zeros_like(x_buf)                   # zero the B..B_PAD padding rows
    for b in range(B):                                    # static unroll, B is tiny
        idx = jnp.clip(ids_ref[b], 0, VOCAB - 1)          # defensive clamp of token id
        row = emb_ref[pl.ds(idx, 1), :]                   # (1, H_PAD) f32 dynamic row read
        x_buf[pl.ds(b, 1), :] = row * mask_ref[b]         # scalar CLS-mask multiply

    # --- Encoder matmul on the MXU: bf16 x bf16 -> f32 accumulate. ---
    x = x_buf[...].astype(jnp.bfloat16)                   # exact: mask is 0/1
    hidden = jnp.tanh(
        jnp.dot(x, w_enc_ref[...], preferred_element_type=jnp.float32)
        + b_enc_ref[...])                                 # (B_PAD, H_PAD) f32

    # --- Reward head: VPU multiply + lane reduce (no zero-padded MXU pass). ---
    head = (jnp.sum(hidden * w_head_ref[...], axis=-1, keepdims=True)
            + b_head_ref[0])                              # (B_PAD, 1)
    col = jax.lax.broadcasted_iota(jnp.int32, (B_PAD, OUT_PAD), 1)
    out_ref[...] = jnp.where(col == 0, head, 0.0)         # lane-dense unmasked store


def reward_model_forward(input_ids, attention_mask, padded_params):
    cls_ids = input_ids[:, 0].astype(jnp.int32)                    # (B,)   -> SMEM
    cls_mask = attention_mask[:, 0].astype(jnp.float32)            # (B,)   -> SMEM

    out = pl.pallas_call(
        reward_cls_kernel,
        out_shape=jax.ShapeDtypeStruct((B_PAD, OUT_PAD), jnp.float32),
        # No grid: the whole (tiny) problem is one VMEM-resident block (~130 KiB of
        # parameters); every VMEM tile is either full-array shaped or a full
        # (8, 128)-aligned slab.  A batch grid with dimension_semantics=("parallel",)
        # would only be needed once the batch grows beyond a single sublane tile.
        in_specs=[
            pl.BlockSpec(memory_space=pltpu.MemorySpace.SMEM),     # CLS token ids (B,)
            pl.BlockSpec(memory_space=pltpu.MemorySpace.SMEM),     # CLS mask (B,)
            pl.BlockSpec((VOCAB, H_PAD), lambda: (0, 0)),          # embedding table (f32, 32 KiB)
            pl.BlockSpec((H_PAD, H_PAD), lambda: (0, 0)),          # W_enc (bf16, padded)
            pl.BlockSpec((1, H_PAD), lambda: (0, 0)),              # b_enc (f32, padded)
            pl.BlockSpec((1, H_PAD), lambda: (0, 0)),              # w_head row (f32, padded)
            pl.BlockSpec(memory_space=pltpu.MemorySpace.SMEM),     # b_head scalar (1,)
        ],
        out_specs=pl.BlockSpec((B_PAD, OUT_PAD), lambda: (0, 0)),  # lane-dense output slab
        scratch_shapes=[
            pltpu.VMEM((B_PAD, H_PAD), jnp.float32),               # gathered/masked CLS rows
        ],
    )(cls_ids, cls_mask, padded_params["embedding"], padded_params["w_enc"],
      padded_params["b_enc"], padded_params["w_head_row"], padded_params["b_head"])

    return out[:B, :1]                                             # logical (B, 1) reward


def reference_forward(input_ids, attention_mask, params):
    """Pure-JAX reference with the original full-sequence semantics."""
    emb = jnp.take(params["embedding"], input_ids, axis=0)
    x = emb * attention_mask.astype(jnp.float32)[:, :, None]
    hidden = jnp.tanh(x.reshape(B * S, H) @ params["w_enc"]
                      + params["b_enc"]).reshape(B, S, H)
    cls = hidden[:, 0, :]
    return cls @ params["w_head"] + params["b_head"]


def init_params(key):
    k_emb, k_enc_w, k_enc_b, k_head_w, k_head_b = jax.random.split(key, 5)
    return {
        "embedding": jax.random.normal(k_emb, (VOCAB, H), jnp.float32) * 0.02,
        "w_enc": jax.random.normal(k_enc_w, (H, H), jnp.float32) * (1.0 / H ** 0.5),
        "b_enc": jax.random.normal(k_enc_b, (1, H), jnp.float32) * 0.01,
        # reward_head: nn.Linear(hidden_size, 1)
        "w_head": jax.random.normal(k_head_w, (H, 1), jnp.float32) * (1.0 / H ** 0.5),
        "b_head": jax.random.normal(k_head_b, (1, 1), jnp.float32) * 0.01,
    }


def pad_params(p):
    """Zero-pad parameters once (offline) to lane-dense kernel shapes.

    Zero padding is exact: padded embedding/weight rows & columns contribute
    nothing, tanh(0 + 0) = 0, and padded head lanes are masked to 0 in-kernel.
    W_enc is stored bf16 (MXU-native input dtype; halves the largest weight's
    HBM->VMEM traffic); everything else stays f32.
    """
    return {
        "embedding": jnp.zeros((VOCAB, H_PAD), jnp.float32).at[:, :H].set(p["embedding"]),
        "w_enc": jnp.zeros((H_PAD, H_PAD), jnp.float32)
                    .at[:H, :H].set(p["w_enc"]).astype(jnp.bfloat16),
        "b_enc": jnp.zeros((1, H_PAD), jnp.float32).at[:, :H].set(p["b_enc"]),
        "w_head_row": jnp.zeros((1, H_PAD), jnp.float32).at[:, :H].set(p["w_head"].T),
        "b_head": p["b_head"].reshape((1,)).astype(jnp.float32),
    }


if __name__ == "__main__":
    key = jax.random.PRNGKey(0)
    k_params, k_ids = jax.random.split(key)

    params = init_params(k_params)
    padded_params = pad_params(params)

    input_ids = jax.random.randint(k_ids, (B, S), 0, VOCAB, dtype=jnp.int32)
    # attention mask with a padded tail (last 2 tokens of batch element 1 masked)
    attention_mask = jnp.ones((B, S), jnp.int32).at[1, -2:].set(0)

    reward = reward_model_forward(input_ids, attention_mask, padded_params)
    reward = jax.block_until_ready(reward)

    # Reference uses the same effective (bf16-round-tripped) encoder weights the
    # kernel sees, so the comparison is tight; all other math is f32 in both paths.
    ref_params = dict(params)
    ref_params["embedding"] = params["embedding"].astype(jnp.bfloat16).astype(jnp.float32)
    ref_params["w_enc"] = params["w_enc"].astype(jnp.bfloat16).astype(jnp.float32)
    ref = reference_forward(input_ids, attention_mask, ref_params)

    assert reward.shape == (B, 1), reward.shape
    assert jnp.allclose(reward, ref, atol=1e-4, rtol=1e-4), (reward, ref)

    print("KERNEL_OK")
</pallas_src>

<mosaic_0001>
module attributes {stable_mosaic.version = 11 : i64} {
  func.func @reward_cls_kernel(%arg0: memref<2xi32, #tpu.memory_space<smem>>, %arg1: memref<2xf32, #tpu.memory_space<smem>>, %arg2: memref<64x128xf32, #tpu.memory_space<vmem>>, %arg3: memref<128x128xbf16, #tpu.memory_space<vmem>>, %arg4: memref<1x128xf32, #tpu.memory_space<vmem>>, %arg5: memref<1x128xf32, #tpu.memory_space<vmem>>, %arg6: memref<1xf32, #tpu.memory_space<smem>>, %arg7: memref<8x128xf32, #tpu.memory_space<vmem>>, %arg8: memref<8x128xf32, #tpu.memory_space<vmem>>) attributes {dimension_semantics = [], scalar_prefetch = 0 : i64, scratch_operands = 1 : i64, tpu.core_type = #tpu.core_type<tc>} {
    %cst = arith.constant 0.000000e+00 : f32
    %0 = vector.broadcast %cst : f32 to vector<8x128xf32>
    %c0 = arith.constant 0 : index
    %c0_0 = arith.constant 0 : index
    %1 = vector.load %arg8[%c0, %c0_0] : memref<8x128xf32, #tpu.memory_space<vmem>>, vector<8x128xf32>
    tpu.vector_store %arg8[%c0, %c0_0], %0 {strides = array<i32>} : memref<8x128xf32, #tpu.memory_space<vmem>>, vector<8x128xf32>,
    %c0_1 = arith.constant 0 : index
    %2 = memref.load %arg0[%c0_1] : memref<2xi32, #tpu.memory_space<smem>>
    %c0_i32 = arith.constant 0 : i32
    %c63_i32 = arith.constant 63 : i32
    %3 = arith.maxsi %c0_i32, %2 : i32
    %4 = arith.minsi %c63_i32, %3 : i32
    %5 = arith.index_cast %4 : i32 to index
    %c0_2 = arith.constant 0 : index
    %6 = vector.load %arg2[%5, %c0_2] : memref<64x128xf32, #tpu.memory_space<vmem>>, vector<1x128xf32>
    %c0_3 = arith.constant 0 : index
    %7 = memref.load %arg1[%c0_3] : memref<2xf32, #tpu.memory_space<smem>>
    %8 = vector.broadcast %7 : f32 to vector<1x128xf32>
    %9 = arith.mulf %6, %8 : vector<1x128xf32>
    %c0_4 = arith.constant 0 : index
    %c0_5 = arith.constant 0 : index
    %10 = vector.load %arg8[%c0_4, %c0_5] : memref<8x128xf32, #tpu.memory_space<vmem>>, vector<1x128xf32>
    tpu.vector_store %arg8[%c0_4, %c0_5], %9 {strides = array<i32>} : memref<8x128xf32, #tpu.memory_space<vmem>>, vector<1x128xf32>,
    %c1 = arith.constant 1 : index
    %11 = memref.load %arg0[%c1] : memref<2xi32, #tpu.memory_space<smem>>
    %c0_i32_6 = arith.constant 0 : i32
    %c63_i32_7 = arith.constant 63 : i32
    %12 = arith.maxsi %c0_i32_6, %11 : i32
    %13 = arith.minsi %c63_i32_7, %12 : i32
    %14 = arith.index_cast %13 : i32 to index
    %c0_8 = arith.constant 0 : index
    %15 = vector.load %arg2[%14, %c0_8] : memref<64x128xf32, #tpu.memory_space<vmem>>, vector<1x128xf32>
    %c1_9 = arith.constant 1 : index
    %16 = memref.load %arg1[%c1_9] : memref<2xf32, #tpu.memory_space<smem>>
    %17 = vector.broadcast %16 : f32 to vector<1x128xf32>
    %18 = arith.mulf %15, %17 : vector<1x128xf32>
    %c1_10 = arith.constant 1 : index
    %c0_11 = arith.constant 0 : index
    %19 = vector.load %arg8[%c1_10, %c0_11] : memref<8x128xf32, #tpu.memory_space<vmem>>, vector<1x128xf32>
    tpu.vector_store %arg8[%c1_10, %c0_11], %18 {strides = array<i32>} : memref<8x128xf32, #tpu.memory_space<vmem>>, vector<1x128xf32>,
    %c0_12 = arith.constant 0 : index
    %c0_13 = arith.constant 0 : index
    %20 = vector.load %arg8[%c0_12, %c0_13] : memref<8x128xf32, #tpu.memory_space<vmem>>, vector<8x128xf32>
    %21 = arith.truncf %20 : vector<8x128xf32> to vector<8x128xbf16>
    %c0_14 = arith.constant 0 : index
    %c0_15 = arith.constant 0 : index
    %22 = vector.load %arg3[%c0_14, %c0_15] : memref<128x128xbf16, #tpu.memory_space<vmem>>, vector<128x128xbf16>
    %cst_16 = arith.constant dense<0.000000e+00> : vector<8x128xf32>
    %23 = tpu.matmul %21, %22, %cst_16 {dimension_numbers = #tpu.dot_dimension_numbers<[1], [0], [0], [1], [0, 0, 1, 1], [], []>} : vector<8x128xbf16>, vector<128x128xbf16>, vector<8x128xf32> -> vector<8x128xf32>
    %c0_17 = arith.constant 0 : index
    %c0_18 = arith.constant 0 : index
    %24 = vector.load %arg4[%c0_17, %c0_18] : memref<1x128xf32, #tpu.memory_space<vmem>>, vector<1x128xf32>
    %25 = vector.broadcast %24 : vector<1x128xf32> to vector<8x128xf32>
    %26 = arith.addf %23, %25 : vector<8x128xf32>
    %27 = math.tanh %26 : vector<8x128xf32>
    %c0_19 = arith.constant 0 : index
    %c0_20 = arith.constant 0 : index
    %28 = vector.load %arg5[%c0_19, %c0_20] : memref<1x128xf32, #tpu.memory_space<vmem>>, vector<1x128xf32>
    %29 = vector.broadcast %28 : vector<1x128xf32> to vector<8x128xf32>
    %30 = arith.mulf %27, %29 : vector<8x128xf32>
    %cst_21 = arith.constant dense<0.000000e+00> : vector<8xf32>
    %31 = vector.multi_reduction <add>, %30, %cst_21 [1] : vector<8x128xf32> to vector<8xf32>
    %32 = vector.shape_cast %31 : vector<8xf32> to vector<8x1xf32>
    %c0_22 = arith.constant 0 : index
    %33 = memref.load %arg6[%c0_22] : memref<1xf32, #tpu.memory_space<smem>>
    %34 = vector.broadcast %33 : f32 to vector<8x1xf32>
    %35 = arith.addf %32, %34 : vector<8x1xf32>
    %36 = tpu.iota {dimensions = array<i32: 1>} : vector<8x128xi32>
    %c0_i32_23 = arith.constant 0 : i32
    %37 = vector.broadcast %c0_i32_23 : i32 to vector<8x128xi32>
    %38 = arith.cmpi eq, %36, %37 : vector<8x128xi32>
    %cst_24 = arith.constant 0.000000e+00 : f32
    %39 = vector.shape_cast %35 : vector<8x1xf32> to vector<8x1xf32>
    %40 = vector.broadcast %39 : vector<8x1xf32> to vector<8x128xf32>
    %41 = vector.broadcast %cst_24 : f32 to vector<8x128xf32>
    %42 = arith.select %38, %40, %41 : vector<8x128xi1>, vector<8x128xf32>
    %c0_25 = arith.constant 0 : index
    %c0_26 = arith.constant 0 : index
    %43 = vector.load %arg7[%c0_25, %c0_26] : memref<8x128xf32, #tpu.memory_space<vmem>>, vector<8x128xf32>
    tpu.vector_store %arg7[%c0_25, %c0_26], %42 {strides = array<i32>} : memref<8x128xf32, #tpu.memory_space<vmem>>, vector<8x128xf32>,
    return
  }
}

</mosaic_0001>

<llo_original>
// kernel: tpu_custom_call.1
$region0: #{tpu_custom_call.1}
  #allocation0 [shape = 'u32[]', space=smem, size = 0x4, offset = 0x4, fixed_abs, tag = 'smem constant byte address 0x4 - core index']
  #allocation1 [shape = 'u32[144,128]{1,0:T(1,128)}', space=vmem, size = 0x12000, scoped, tag = 'internal scratch']
  #allocation2 [shape = 'f32[8,128]{1,0:T(8,128)}', space=vmem, size = 0x1000, scoped, tag = 'scratch operand']
  #allocation3 [shape = 'f32[1]{0:T(128)S(6)}', space=smem, size = 0x200, scoped, tag = 'scoped memory for tpu_custom_call.1']
  %s0 = inlined_call_operand.vmem [shape: s32[2], index: 0, kind: input, shape index: {}]
  %s1 = inlined_call_operand.vmem [shape: f32[2], index: 1, kind: input, shape index: {}]
  %s2 = inlined_call_operand.hbm [shape: f32[64,128], index: 2, kind: input, shape index: {}]
  %s3 = inlined_call_operand.hbm [shape: bf16[128,128], index: 3, kind: input, shape index: {}]
  %s4 = inlined_call_operand.vmem [shape: f32[1,128], index: 4, kind: input, shape index: {}]
  %s5 = inlined_call_operand.vmem [shape: f32[1,128], index: 5, kind: input, shape index: {}]
  %s6 = inlined_call_operand.<no memory space> [shape: f32[1], index: 6, kind: input, shape index: {}]
  %s7 = inlined_call_operand.hbm [shape: f32[8,128], index: 7, kind: output, shape index: {}]
  %s8 = sld [smem:[#allocation0]]
  $region54: #{tpu_custom_call.1} parent=0
    _
  %s10 = ssub.s32 1, %s8
  %s11 = scalar_select 0, %s10, %s8
  %12 = sst [smem:[#allocation3]] %s6
  $region1: #{tpu_custom_call.1} parent=0
    #allocation4 [shape = 'u8[512]{0}', space=smem, size = 0x200, scoped, tag = 'input window, operand 0, single buffered']
    #allocation5 [shape = 's32[1]{0}', space=sflag, size = 0x4, scoped, tag = 'scoped memory for tpu_custom_call.1']
    #allocation6 [shape = 's32[1]{0}', space=sflag, size = 0x4, scoped, tag = 'scoped memory for tpu_custom_call.1']
    #allocation7 [shape = 's32[1]{0}', space=sflag, size = 0x4, scoped, tag = 'scoped memory for tpu_custom_call.1']
    #allocation8 [shape = 'u8[512]{0}', space=smem, size = 0x200, scoped, tag = 'input window, operand 1, single buffered']
    #allocation9 [shape = 's32[1]{0}', space=sflag, size = 0x4, scoped, tag = 'scoped memory for tpu_custom_call.1']
    #allocation10 [shape = 'u8[32768]{0}', space=vmem, size = 0x8000, scoped, tag = 'input window, operand 2, single buffered']
    #allocation11 [shape = 'u8[32768]{0}', space=vmem, size = 0x8000, scoped, tag = 'input window, operand 3, single buffered']
    #allocation12 [shape = 's32[1]{0}', space=sflag, size = 0x4, scoped, tag = 'scoped memory for tpu_custom_call.1']
    #allocation13 [shape = 'u8[4096]{0}', space=vmem, size = 0x1000, scoped, tag = 'output window, operand 0, single buffered']
    %13 = vsyncpa [#allocation7], 0
    %14 = vsyncpa [#allocation9], 0
    %15 = vsyncpa [#allocation5], 0
    %16 = vsyncpa [#allocation12], 0
    %17 = vsyncpa [#allocation6], 0
    // Predicated region
    $region2: #{tpu_custom_call.1} parent=1 // pred_check
      _
    $region3: #{tpu_custom_call.1} parent=1 // pred_check_branch
      %19 = sbr.rel (0) target = $region5
    $region4: #{tpu_custom_call.1} parent=1 // pred_region
      %s21 = ssub.s32 16, 16
      %22 = vsyncadd [#allocation7], %s21
      %s24 = sshll.u32 %s0, 4
      %s25 = int_to_ptr.vmem [resolvable:$true] %s24
      %27 = dma.vmem_to_smem %s25, 16, [#allocation4], [#allocation7]
    $region5: #{tpu_custom_call.1} parent=1 // pred_fallthru
      _
    // Predicated region
    $region6: #{tpu_custom_call.1} parent=1 // pred_check
      _
    $region7: #{tpu_custom_call.1} parent=1 // pred_check_branch
      %29 = sbr.rel (0) target = $region9
    $region8: #{tpu_custom_call.1} parent=1 // pred_region
      %s31 = ssub.s32 16, 16
      %32 = vsyncadd [#allocation9], %s31
      %s34 = sshll.u32 %s1, 4
      %s35 = int_to_ptr.vmem [resolvable:$true] %s34
      %37 = dma.vmem_to_smem %s35, 16, [#allocation8], [#allocation9]
    $region9: #{tpu_custom_call.1} parent=1 // pred_fallthru
      _
    // Predicated region
    $region10: #{tpu_custom_call.1} parent=1 // pred_check
      _
    $region11: #{tpu_custom_call.1} parent=1 // pred_check_branch
      %39 = sbr.rel (0) target = $region13
    $region12: #{tpu_custom_call.1} parent=1 // pred_region
      %s41 = ssub.s32 1024, 1024
      %42 = vsyncadd [#allocation5], %s41
      %s43 = sshll.u32 [#allocation10], 4
      %s44 = int_to_ptr.vmem [resolvable:$true] %s43
      %49 = dma.hbm_to_vmem [thread:$0]  %s2, 1024, %s44, [#allocation5], 128, 128, 8
    $region13: #{tpu_custom_call.1} parent=1 // pred_fallthru
      _
    // Predicated region
    $region14: #{tpu_custom_call.1} parent=1 // pred_check
      _
    $region15: #{tpu_custom_call.1} parent=1 // pred_check_branch
      %51 = sbr.rel (0) target = $region17
    $region16: #{tpu_custom_call.1} parent=1 // pred_region
      %s53 = ssub.s32 1024, 1024
      %54 = vsyncadd [#allocation12], %s53
      %s55 = sshll.u32 [#allocation11], 4
      %s56 = int_to_ptr.vmem [resolvable:$true] %s55
      %61 = dma.hbm_to_vmem [thread:$0]  %s3, 1024, %s56, [#allocation12], 64, 64, 4
    $region17: #{tpu_custom_call.1} parent=1 // pred_fallthru
      _
    // Predicated region
    $region18: #{tpu_custom_call.1} parent=1 // pred_check
      _
    $region19: #{tpu_custom_call.1} parent=1 // pred_check_branch
      %63 = sbr.rel (0) target = $region21
    $region20: #{tpu_custom_call.1} parent=1 // pred_region
      _
    $region21: #{tpu_custom_call.1} parent=1 // pred_fallthru
      _
    // Predicated region
    $region22: #{tpu_custom_call.1} parent=1 // pred_check
      _
    $region23: #{tpu_custom_call.1} parent=1 // pred_check_branch
      %65 = sbr.rel (0) target = $region25
    $region24: #{tpu_custom_call.1} parent=1 // pred_region
      _
    $region25: #{tpu_custom_call.1} parent=1 // pred_fallthru
      _
    // Predicated region
    $region26: #{tpu_custom_call.1} parent=1 // pred_check
      _
    $region27: #{tpu_custom_call.1} parent=1 // pred_check_branch
      %67 = sbr.rel (0) target = $region29
    $region28: #{tpu_custom_call.1} parent=1 // pred_region
      _
    $region29: #{tpu_custom_call.1} parent=1 // pred_fallthru
      _
    // Predicated region
    $region30: #{tpu_custom_call.1} parent=1 // pred_check
      _
    $region31: #{tpu_custom_call.1} parent=1 // pred_check_branch
      %69 = sbr.rel (0) target = $region33
    $region32: #{tpu_custom_call.1} parent=1 // pred_region
      %70 = dma.done [#allocation7], 16
    $region33: #{tpu_custom_call.1} parent=1 // pred_fallthru
      _
    // Predicated region
    $region34: #{tpu_custom_call.1} parent=1 // pred_check
      _
    $region35: #{tpu_custom_call.1} parent=1 // pred_check_branch
      %72 = sbr.rel (0) target = $region37
    $region36: #{tpu_custom_call.1} parent=1 // pred_region
      %73 = dma.done [#allocation9], 16
    $region37: #{tpu_custom_call.1} parent=1 // pred_fallthru
      _
    // Predicated region
    $region38: #{tpu_custom_call.1} parent=1 // pred_check
      _
    $region39: #{tpu_custom_call.1} parent=1 // pred_check_branch
      %75 = sbr.rel (0) target = $region41
    $region40: #{tpu_custom_call.1} parent=1 // pred_region
      %76 = dma.done [#allocation5], 1024
    $region41: #{tpu_custom_call.1} parent=1 // pred_fallthru
      _
    // Predicated region
    $region42: #{tpu_custom_call.1} parent=1 // pred_check
      _
    $region43: #{tpu_custom_call.1} parent=1 // pred_check_branch
      %78 = sbr.rel (0) target = $region45
    $region44: #{tpu_custom_call.1} parent=1 // pred_region
      %79 = dma.done [#allocation12], 1024
    $region45: #{tpu_custom_call.1} parent=1 // pred_fallthru
      _
    %80 = sfence
    %82 = vst [vmem:[#allocation2] sm:$0xff] 0.0
    %s83 = sld [smem:[#allocation4]]
    %p84 = scmp.gt.s32.totalorder %s83, 0
    %s85 = scalar_select %p84, %s83, 0
    %p86 = scmp.lt.s32.totalorder %s85, 63
    %s87 = scalar_select %p86, %s85, 63
    %s88 = scalar_lea.vmem [#allocation10], %s87
    %v89 = vld [vmem:[%s88] sm:$0x1]
    %s90 = sld [smem:[#allocation8]]
    %v91 = vstv %s90
    %v92 = vmul.f32 %v89, %v91
    %93 = vst [vmem:[#allocation2] sm:$0x1] %v92
    %s94 = sld [smem:[#allocation4 + $0x1]]
    %p95 = scmp.gt.s32.totalorder %s94, 0
    %s96 = scalar_select %p95, %s94, 0
    %p97 = scmp.lt.s32.totalorder %s96, 63
    %s98 = scalar_select %p97, %s96, 63
    %s99 = scalar_lea.vmem [#allocation10], %s98
    %v100 = vld [vmem:[%s99] sm:$0x1]
    %s101 = sld [smem:[#allocation8 + $0x1]]
    %v102 = vstv %s101
    %v103 = vmul.f32 %v100, %v102
    %104 = vst [vmem:[#allocation2 + $0x1] sm:$0x1] %v103
    %v105 = vld [vmem:[#allocation2] sm:$0xff]
    %v106 = vpack.c.bf16 %v105, %v105
    %v107 = vld [vmem:[#allocation11] sm:$0xf]
    %v108 = vld [vmem:[#allocation11 + $0x4] sm:$0xf]
    %v109 = vld [vmem:[#allocation11 + $0x8] sm:$0xf]
    %v110 = vld [vmem:[#allocation11 + $0xc] sm:$0xf]
    %v111 = vld [vmem:[#allocation11 + $0x10] sm:$0xf]
    %v112 = vld [vmem:[#allocation11 + $0x14] sm:$0xf]
    %v113 = vld [vmem:[#allocation11 + $0x18] sm:$0xf]
    %v114 = vld [vmem:[#allocation11 + $0x1c] sm:$0xf]
    %v115 = vld [vmem:[#allocation11 + $0x20] sm:$0xf]
    %v116 = vld [vmem:[#allocation11 + $0x24] sm:$0xf]
    %v117 = vld [vmem:[#allocation11 + $0x28] sm:$0xf]
    %v118 = vld [vmem:[#allocation11 + $0x2c] sm:$0xf]
    %v119 = vld [vmem:[#allocation11 + $0x30] sm:$0xf]
    %v120 = vld [vmem:[#allocation11 + $0x34] sm:$0xf]
    %v121 = vld [vmem:[#allocation11 + $0x38] sm:$0xf]
    %v122 = vld [vmem:[#allocation11 + $0x3c] sm:$0xf]
    %v123 = vld [vmem:[%s4] sm:$0x1]
    %v125 = vlaneseq
    %v126 = vshrl.u32 %v125, 7
    %v127 = vsub.s32 0, %v126
    %v128 = vrot.slane %v123, %v127
    %v146 = vunpack.c.l.b16 %v107
    %v147 = vunpack.c.l.b16 %v108
    %v148 = vunpack.c.l.b16 %v109
    %v149 = vunpack.c.l.b16 %v110
    %v150 = vunpack.c.l.b16 %v111
    %v151 = vunpack.c.l.b16 %v112
    %v152 = vunpack.c.l.b16 %v113
    %v153 = vunpack.c.l.b16 %v114
    %v154 = vunpack.c.l.b16 %v115
    %v155 = vunpack.c.l.b16 %v116
    %v156 = vunpack.c.l.b16 %v117
    %v157 = vunpack.c.l.b16 %v118
    %v158 = vunpack.c.l.b16 %v119
    %v159 = vunpack.c.l.b16 %v120
    %v160 = vunpack.c.l.b16 %v121
    %v161 = vunpack.c.l.b16 %v122
    %v162 = vpack.c.b16 %v147, %v146
    %v163 = vpack.c.b16 %v149, %v148
    %v164 = vpack.c.b16 %v151, %v150
    %v165 = vpack.c.b16 %v153, %v152
    %v166 = vpack.c.b16 %v155, %v154
    %v167 = vpack.c.b16 %v157, %v156
    %v168 = vpack.c.b16 %v159, %v158
    %v169 = vpack.c.b16 %v161, %v160
    %178 = vmatprep.subr.bf16.mxu0 0
    %179 = vmatpush1.bf16.msra.mxu0 %v169
    %180 = vmatprep.subr.bf16.mxu0 0
    %181 = vmatpush1.bf16.msra.mxu0 %v168
    %182 = vmatprep.subr.bf16.mxu0 0
    %183 = vmatpush1.bf16.msra.mxu0 %v167
    %184 = vmatprep.subr.bf16.mxu0 0
    %185 = vmatpush1.bf16.msra.mxu0 %v166
    %186 = vmatprep.subr.bf16.mxu0 0
    %187 = vmatpush1.bf16.msra.mxu0 %v165
    %188 = vmatprep.subr.bf16.mxu0 0
    %189 = vmatpush1.bf16.msra.mxu0 %v164
    %190 = vmatprep.subr.bf16.mxu0 0
    %191 = vmatpush1.bf16.msra.mxu0 %v163
    %192 = vmatprep.subr.bf16.mxu0 0
    %193 = vmatpush1.bf16.msra.mxu0 %v162
    %194 = vmatprep.subr.bf16.mxu0 0
    %195 = vmatpush2.bf16.msra.mxu0 0
    %196 = vmatprep.subr.bf16.mxu0 0
    %197 = vmatpush2.bf16.msra.mxu0 0
    %198 = vmatprep.subr.bf16.mxu0 0
    %199 = vmatpush2.bf16.msra.mxu0 0
    %200 = vmatprep.subr.bf16.mxu0 0
    %201 = vmatpush2.bf16.msra.mxu0 0
    %202 = vmatprep.subr.bf16.mxu0 0
    %203 = vmatpush2.bf16.msra.mxu0 0
    %204 = vmatprep.subr.bf16.mxu0 0
    %205 = vmatpush2.bf16.msra.mxu0 0
    %206 = vmatprep.subr.bf16.mxu0 0
    %207 = vmatpush2.bf16.msra.mxu0 0
    %208 = vmatprep.subr.bf16.mxu0 0
    %209 = vmatpush2.bf16.msra.mxu0 0
    %210 = vmatprep.mubr.bf16.mxu0 0
    %211 = vmatmul.mubr.bf16.gmra.mxu0 %v106
    %v212 = vpop.f32.mrf.mxu0
    %v213 = vadd.f32 %v128, %v212
    %v214 = vpop.f32.mrf.mxu0
    %v215 = vpop.f32.mrf.mxu0
    %v216 = vpop.f32.mrf.mxu0
    %217 = vdwg.mxu0
    %v218 = vtanh.pop %v213
    %v219 = vld [vmem:[%s5] sm:$0x1]
    %v221 = vlaneseq
    %v222 = vshrl.u32 %v221, 7
    %v223 = vsub.s32 0, %v222
    %v224 = vrot.slane %v219, %v223
    %v226 = vmul.f32 %v218, %v224
    %227 = vadd.xlane.f32.xlu0 %v226
    %v228 = vpop.xlane.xlu0 %227
    %s229 = sld [smem:[#allocation3]]
    %v230 = vstv %s229
    %v231 = vadd.f32 %v228, %v230
    %v232 = vlaneseq
    %v233 = vand.u32 %v232, 127
    %vm234 = vcmp.eq.s32.totalorder %v233, 0
    %v235 = vsel %vm234, %v231, 0.0
    %236 = vst [vmem:[#allocation13] sm:$0xff] %v235
    // Predicated region
    $region46: #{tpu_custom_call.1} parent=1 // pred_check
      _
    $region47: #{tpu_custom_call.1} parent=1 // pred_check_branch
      %238 = sbr.rel (0) target = $region49
    $region48: #{tpu_custom_call.1} parent=1 // pred_region
      %s240 = ssub.s32 128, 128
      %241 = vsyncadd [#allocation6], %s240
      %s243 = sshll.u32 [#allocation13], 4
      %s244 = int_to_ptr.vmem [resolvable:$true] %s243
      %246 = dma.vmem_to_hbm [thread:$0]  %s244, 128, %s7, [#allocation6]
    $region49: #{tpu_custom_call.1} parent=1 // pred_fallthru
      _
    // Predicated region
    $region50: #{tpu_custom_call.1} parent=1 // pred_check
      _
    $region51: #{tpu_custom_call.1} parent=1 // pred_check_branch
      %248 = sbr.rel (0) target = $region53
    $region52: #{tpu_custom_call.1} parent=1 // pred_region
      %249 = dma.done [#allocation6], 128
    $region53: #{tpu_custom_call.1} parent=1 // pred_fallthru
      _
    %250 = vsyncpa [#allocation5], 1
    %251 = vsyncpa [#allocation12], 1
    %252 = vsyncpa [#allocation6], 1
    %253 = vsyncpa [#allocation7], 1
    %254 = vsyncpa [#allocation9], 1

</llo_original>
